<compile_context>
chip_gen: v7x
topology: tpu7x:2x2x1
jax: 0.10.0
libtpu: 0.0.40
codegen_flags: <defaults>
</compile_context>

<pallas_src>
import functools

import jax
import jax.numpy as jnp
from jax.experimental import pallas as pl
from jax.experimental.pallas import tpu as pltpu

EPS = 1e-5  # torch.nn.InstanceNorm1d default eps (affine=False, no running stats)


def unet_up_kernel(x_ref, w_ref, o_ref, *, output_padding):
    # x_ref: (Nb, L, Cin)            batch tile, channels-last
    # w_ref: (Cin, 4*Cout)           taps packed along lanes: lane k*Cout + o = W[i, o, k]
    # o_ref: (Nb, L+1+op, 2*Cout)    packed: lanes [0:Cout]=even positions, [Cout:]=odd
    Nb, L, Cin = x_ref.shape
    C2 = o_ref.shape[2]              # 2 * Cout
    Cout = C2 // 2
    n_pos = jnp.float32(2 * L + 2 + output_padding)   # Lout (InstanceNorm count)

    # --- One fused MXU matmul for all batch rows in this block and all 4 taps ---
    x = x_ref[...].reshape(Nb * L, Cin)
    a = jnp.dot(x, w_ref[...], preferred_element_type=jnp.float32)   # (Nb*L, 4*Cout) f32
    a = a.reshape(Nb, L, 2 * C2)

    head = a[:, :, :C2]   # taps (0,1): contribute to packed row m     ([even|odd])
    tail = a[:, :, C2:]   # taps (2,3): contribute to packed row m + 1 ([even|odd])

    zrow = jnp.zeros((Nb, 1, C2), jnp.float32)
    y = (jnp.concatenate([head, zrow], axis=1)
         + jnp.concatenate([zrow, tail], axis=1))                     # (Nb, L+1, C2)

    # --- InstanceNorm1d (no affine) over all Lout positions per (batch, channel) ---
    # Lanes c and Cout+c hold the same channel (even / odd positions): fold halves on
    # the tiny reduced stats, then broadcast back over the packed layout.
    s = jnp.sum(y, axis=1, keepdims=True)                              # (Nb, 1, C2)
    mean_h = (s[:, :, :Cout] + s[:, :, Cout:]) / n_pos                 # (Nb, 1, Cout)
    mean = jnp.concatenate([mean_h, mean_h], axis=-1)                  # (Nb, 1, C2)
    d = y - mean
    ss = jnp.sum(d * d, axis=1, keepdims=True)
    ss_h = ss[:, :, :Cout] + ss[:, :, Cout:]
    if output_padding:
        # trailing conv-transpose zero position contributes (0 - mean)^2 to the SSE
        ss_h = ss_h + output_padding * (mean_h * mean_h)
    inv_h = jax.lax.rsqrt(ss_h / n_pos + EPS)
    inv = jnp.concatenate([inv_h, inv_h], axis=-1)

    y_norm = jnp.maximum(d * inv, 0.0)                                 # ReLU

    if output_padding:
        # Extra zero position normalizes to ReLU(-mean * inv); the odd lane half of
        # the final packed row is slack and is sliced off in the wrapper.
        extra = jnp.concatenate(
            [jnp.maximum(-mean_h * inv_h, 0.0),
             jnp.zeros((Nb, 1, Cout), jnp.float32)], axis=-1)          # (Nb, 1, C2)
        y_norm = jnp.concatenate([y_norm, extra], axis=1)

    # Single lane-dense store of the whole packed block.
    o_ref[...] = y_norm.astype(o_ref.dtype)


def unet_up_forward(x, skip_input, weight, *, output_padding=0,
                    compute_dtype=jnp.float32, batch_tiles=2):
    """Forward pass of UNetUp (eval-mode: dropout is the identity).

    x:          (N, Cin, L)        -- PyTorch NCL layout
    skip_input: (N, Cskip, Lout)
    weight:     (Cin, Cout, 4)     -- PyTorch ConvTranspose1d weight, bias=False
    returns:    (N, Cout + Cskip, Lout),  Lout = 2L + 2 + output_padding
    """
    N, Cin, L = x.shape
    Cout, K = weight.shape[1], weight.shape[2]
    assert K == 4 and output_padding in (0, 1)
    Lout = (L - 1) * 2 + K + output_padding
    rows = L + 1 + output_padding          # packed rows per batch element

    # Fold batch into the block, but keep >= `batch_tiles` parallel grid steps when
    # divisible so both v7x TensorCores get work; v5e/v6e are single-TC.
    G = batch_tiles if (batch_tiles > 1 and N >= batch_tiles and N % batch_tiles == 0) else 1
    Nb = N // G

    x_nlc = jnp.transpose(x, (0, 2, 1)).astype(compute_dtype)               # (N, L, Cin)
    # Pack the 4 taps along the output-lane axis: w_cat[i, k*Cout + o] = weight[i, o, k]
    w_cat = jnp.transpose(weight, (0, 2, 1)).reshape(Cin, K * Cout).astype(compute_dtype)

    packed = pl.pallas_call(
        functools.partial(unet_up_kernel, output_padding=output_padding),
        out_shape=jax.ShapeDtypeStruct((N, rows, 2 * Cout), jnp.float32),
        grid_spec=pltpu.PrefetchScalarGridSpec(
            num_scalar_prefetch=0,
            grid=(G,),
            in_specs=[
                pl.BlockSpec((Nb, L, Cin), lambda g: (g, 0, 0)),
                pl.BlockSpec((Cin, K * Cout), lambda g: (0, 0)),
            ],
            out_specs=pl.BlockSpec((Nb, rows, 2 * Cout), lambda g: (g, 0, 0)),
        ),
        compiler_params=pltpu.CompilerParams(
            dimension_semantics=("parallel",),
            vmem_limit_bytes=32 * 1024 * 1024,
        ),
    )(x_nlc, w_cat)
    # TODO(synk): for production UNet sizes (Cin=Cout=512, long L) add an L-tiled grid
    # axis with a finalize-at-last-tile InstanceNorm to respect v7x's 64 MiB VMEM.

    # Packed (N, rows, 2*Cout) -> (N, Lout, Cout) is a pure reshape + slice:
    # element [n, m, s*Cout + c] becomes [n, 2m+s, c] (even/odd re-interleave).
    y = packed.reshape(N, 2 * rows, Cout)[:, :Lout, :]
    y = jnp.transpose(y, (0, 2, 1))                                          # (N, Cout, Lout)
    return jnp.concatenate([y, skip_input.astype(y.dtype)], axis=1)


def reference_forward(x, skip_input, weight, output_padding=0):
    """Pure-JAX reference mirroring the PyTorch UNetUp semantics."""
    N, Cin, L = x.shape
    Cout, K = weight.shape[1], weight.shape[2]
    Lout = (L - 1) * 2 + K + output_padding
    contrib = jnp.einsum('ncl,cok->nolk', x, weight)      # (N, Cout, L, K)
    y = jnp.zeros((N, Cout, Lout), jnp.float32)
    for k in range(K):
        y = y.at[:, :, k:k + 2 * L:2].add(contrib[:, :, :, k])
    mean = jnp.mean(y, axis=2, keepdims=True)
    var = jnp.mean((y - mean) ** 2, axis=2, keepdims=True)
    y = jnp.maximum((y - mean) * jax.lax.rsqrt(var + EPS), 0.0)
    return jnp.concatenate([y, skip_input], axis=1)


if __name__ == "__main__":
    key = jax.random.PRNGKey(0)
    k1, k2, k3 = jax.random.split(key, 3)

    N, Cin, Cout, L = 4, 8, 8, 16
    x = jax.random.normal(k1, (N, Cin, L), jnp.float32)
    # ConvTranspose1d weight: (in_channels, out_channels, kernel_size), bias=False
    weight = 0.1 * jax.random.normal(k3, (Cin, Cout, 4), jnp.float32)

    # Check both decoder configurations: output_padding=0 (up2) and 1 (up1/up3).
    for op in (0, 1):
        Lout = 2 * L + 2 + op
        skip = jax.random.normal(k2, (N, Cout, Lout), jnp.float32)

        out = jax.block_until_ready(unet_up_forward(x, skip, weight, output_padding=op))
        ref = reference_forward(x, skip, weight, output_padding=op)

        assert out.shape == (N, 2 * Cout, Lout), out.shape
        max_err = float(jnp.max(jnp.abs(out - ref)))
        assert max_err < 2e-3, f"output_padding={op}: max abs err = {max_err}"

    print("KERNEL_OK")
</pallas_src>

<mosaic_0001>
module attributes {stable_mosaic.version = 11 : i64} {
  func.func @unet_up_kernel(%arg0: i32, %arg1: memref<2x16x8xf32, #tpu.memory_space<vmem>>, %arg2: memref<8x32xf32, #tpu.memory_space<vmem>>, %arg3: memref<2x17x16xf32, #tpu.memory_space<vmem>>) attributes {dimension_semantics = [#tpu.dimension_semantics<parallel>], iteration_bounds = array<i64: 2>, scalar_prefetch = 0 : i64, scratch_operands = 0 : i64, tpu.core_type = #tpu.core_type<tc>, window_params = [{transform_indices = @transform_0, window_bounds = array<i64: 2, 16, 8>}, {pipeline_mode = #tpu.pipeline_mode<synchronous>, transform_indices = @transform_1, window_bounds = array<i64: 8, 32>}, {transform_indices = @transform_2, window_bounds = array<i64: 2, 17, 16>}]} {
    %c0 = arith.constant 0 : index
    %c0_0 = arith.constant 0 : index
    %c0_1 = arith.constant 0 : index
    %0 = vector.load %arg1[%c0, %c0_0, %c0_1] : memref<2x16x8xf32, #tpu.memory_space<vmem>>, vector<2x16x8xf32>
    %1 = vector.shape_cast %0 : vector<2x16x8xf32> to vector<32x8xf32>
    %c0_2 = arith.constant 0 : index
    %c0_3 = arith.constant 0 : index
    %2 = vector.load %arg2[%c0_2, %c0_3] : memref<8x32xf32, #tpu.memory_space<vmem>>, vector<8x32xf32>
    %cst = arith.constant dense<0.000000e+00> : vector<32x32xf32>
    %3 = tpu.matmul %1, %2, %cst {dimension_numbers = #tpu.dot_dimension_numbers<[1], [0], [0], [1], [0, 0, 1, 1], [], []>} : vector<32x8xf32>, vector<8x32xf32>, vector<32x32xf32> -> vector<32x32xf32>
    %4 = vector.shape_cast %3 : vector<32x32xf32> to vector<2x16x32xf32>
    %5 = vector.extract_strided_slice %4 {offsets = [0, 0, 0], sizes = [2, 16, 16], strides = [1, 1, 1]} : vector<2x16x32xf32> to vector<2x16x16xf32>
    %6 = vector.extract_strided_slice %4 {offsets = [0, 0, 16], sizes = [2, 16, 16], strides = [1, 1, 1]} : vector<2x16x32xf32> to vector<2x16x16xf32>
    %cst_4 = arith.constant 0.000000e+00 : f32
    %7 = vector.broadcast %cst_4 : f32 to vector<2x1x16xf32>
    %8 = tpu.concatenate %5, %7 in 1 : vector<2x16x16xf32>, vector<2x1x16xf32> -> vector<2x17x16xf32>
    %9 = tpu.concatenate %7, %6 in 1 : vector<2x1x16xf32>, vector<2x16x16xf32> -> vector<2x17x16xf32>
    %10 = arith.addf %8, %9 : vector<2x17x16xf32>
    %cst_5 = arith.constant dense<0.000000e+00> : vector<2x16xf32>
    %11 = vector.multi_reduction <add>, %10, %cst_5 [1] : vector<2x17x16xf32> to vector<2x16xf32>
    %12 = vector.shape_cast %11 : vector<2x16xf32> to vector<2x1x16xf32>
    %13 = vector.extract_strided_slice %12 {offsets = [0, 0, 0], sizes = [2, 1, 8], strides = [1, 1, 1]} : vector<2x1x16xf32> to vector<2x1x8xf32>
    %14 = vector.extract_strided_slice %12 {offsets = [0, 0, 8], sizes = [2, 1, 8], strides = [1, 1, 1]} : vector<2x1x16xf32> to vector<2x1x8xf32>
    %15 = arith.addf %13, %14 : vector<2x1x8xf32>
    %cst_6 = arith.constant 3.400000e+01 : f32
    %16 = vector.broadcast %cst_6 : f32 to vector<2x1x8xf32>
    %17 = arith.divf %15, %16 : vector<2x1x8xf32>
    %18 = tpu.concatenate %17, %17 in 2 : vector<2x1x8xf32>, vector<2x1x8xf32> -> vector<2x1x16xf32>
    %19 = vector.broadcast %18 : vector<2x1x16xf32> to vector<2x17x16xf32>
    %20 = arith.subf %10, %19 : vector<2x17x16xf32>
    %21 = arith.mulf %20, %20 : vector<2x17x16xf32>
    %cst_7 = arith.constant dense<0.000000e+00> : vector<2x16xf32>
    %22 = vector.multi_reduction <add>, %21, %cst_7 [1] : vector<2x17x16xf32> to vector<2x16xf32>
    %23 = vector.shape_cast %22 : vector<2x16xf32> to vector<2x1x16xf32>
    %24 = vector.extract_strided_slice %23 {offsets = [0, 0, 0], sizes = [2, 1, 8], strides = [1, 1, 1]} : vector<2x1x16xf32> to vector<2x1x8xf32>
    %25 = vector.extract_strided_slice %23 {offsets = [0, 0, 8], sizes = [2, 1, 8], strides = [1, 1, 1]} : vector<2x1x16xf32> to vector<2x1x8xf32>
    %26 = arith.addf %24, %25 : vector<2x1x8xf32>
    %cst_8 = arith.constant 3.400000e+01 : f32
    %27 = vector.broadcast %cst_8 : f32 to vector<2x1x8xf32>
    %28 = arith.divf %26, %27 : vector<2x1x8xf32>
    %cst_9 = arith.constant 9.99999974E-6 : f32
    %29 = vector.broadcast %cst_9 : f32 to vector<2x1x8xf32>
    %30 = arith.addf %28, %29 : vector<2x1x8xf32>
    %31 = math.rsqrt %30 : vector<2x1x8xf32>
    %32 = tpu.concatenate %31, %31 in 2 : vector<2x1x8xf32>, vector<2x1x8xf32> -> vector<2x1x16xf32>
    %33 = vector.broadcast %32 : vector<2x1x16xf32> to vector<2x17x16xf32>
    %34 = arith.mulf %20, %33 : vector<2x17x16xf32>
    %cst_10 = arith.constant 0.000000e+00 : f32
    %35 = vector.broadcast %cst_10 : f32 to vector<2x17x16xf32>
    %36 = arith.maximumf %34, %35 : vector<2x17x16xf32>
    %c0_11 = arith.constant 0 : index
    %c0_12 = arith.constant 0 : index
    %c0_13 = arith.constant 0 : index
    %37 = vector.load %arg3[%c0_11, %c0_12, %c0_13] : memref<2x17x16xf32, #tpu.memory_space<vmem>>, vector<2x17x16xf32>
    tpu.vector_store %arg3[%c0_11, %c0_12, %c0_13], %36 {strides = array<i32>} : memref<2x17x16xf32, #tpu.memory_space<vmem>>, vector<2x17x16xf32>,
    return
  }
  func.func @transform_0(%arg0: i32) -> (i32, i32, i32) {
    %c0_i32 = arith.constant 0 : i32
    %c0_i32_0 = arith.constant 0 : i32
    %c0_i32_1 = arith.constant 0 : i32
    return %arg0, %c0_i32, %c0_i32_0 : i32, i32, i32
  }
  func.func @transform_1(%arg0: i32) -> (i32, i32) {
    %c0_i32 = arith.constant 0 : i32
    %c0_i32_0 = arith.constant 0 : i32
    %c0_i32_1 = arith.constant 0 : i32
    return %c0_i32, %c0_i32_0 : i32, i32
  }
  func.func @transform_2(%arg0: i32) -> (i32, i32, i32) {
    %c0_i32 = arith.constant 0 : i32
    %c0_i32_0 = arith.constant 0 : i32
    %c0_i32_1 = arith.constant 0 : i32
    return %arg0, %c0_i32, %c0_i32_0 : i32, i32, i32
  }
}

</mosaic_0001>

<llo_original>
// kernel: tpu_custom_call.1
$region0: #{tpu_custom_call.1}
  #allocation0 [shape = 'u32[]', space=smem, size = 0x4, offset = 0x4, fixed_abs, tag = 'smem constant byte address 0x4 - core index']
  #allocation1 [shape = 'u32[144,128]{1,0:T(1,128)}', space=vmem, size = 0x12000, scoped, tag = 'internal scratch']
  %s0 = inlined_call_operand.vmem [shape: f32[4,16,8], index: 0, kind: input, shape index: {}]
  %s1 = inlined_call_operand.vmem [shape: f32[8,32], index: 1, kind: input, shape index: {}]
  %s2 = inlined_call_operand.vmem [shape: f32[4,17,16], index: 2, kind: output, shape index: {}]
  %s3 = sld [smem:[#allocation0]]
  $region41: #{tpu_custom_call.1} parent=0
    _
  %s5 = ssub.s32 1, %s3
  %s6 = scalar_select 0, %s5, %s3
  loop: start=0, step=1, limit=4
  $region2: #{tpu_custom_call.1} parent=0 // loop_pre_header
    _
  $region3: #{tpu_custom_call.1} parent=0 // loop_header
    %s8 = sphi 0, %s12
    %p9 = scmp.ge.s32.totalorder %s8, 4
    %s18 = sphi 0, %s20
    %s21 = sphi 0, %s18
    %s22 = sphi 0, %s21
    %s38 = sphi 0, %s22
    %s42 = sphi 0, %s42
    %s44 = sphi 0, %s42
    %s45 = sphi 0, %s44
    %s59 = sphi 0, %s45
    %s65 = sphi 0, %s67
    %s68 = sphi 0, %s65
    %s69 = sphi 0, %s68
    %s85 = sphi 0, %s69
  $region4: #{tpu_custom_call.1} parent=0 // loop_header_branch
    %11 = sbr.rel (%p9) target = $region8
  $region5: #{tpu_custom_call.1} parent=0 // loop_body
    %s13 = ssub.s32 %s8, 1
    %s14 = ssub.s32 %s8, 2
    %s15 = sadd.s32 %s8, 1
    %s16 = ssub.s32 %s8, %s15
    %p17 = scmp.eq.s32.totalorder %s16, 0
    %s19 = sadd.s32 %s18, 1
    %s20 = scalar_select %p17, %s18, %s19
    %p23 = pneg %p17
    %p24 = scmp.eq.s32.totalorder %s8, 1
    %p25 = por %p23, %p24
    %p26 = scmp.ne.s32.totalorder %s18, %s21
    %p27 = scmp.eq.s32.totalorder %s8, 0
    %p28 = por %p26, %p27
    %p29 = scmp.ne.s32.totalorder %s18, %s21
    %p30 = scmp.eq.s32.totalorder %s13, 1
    %p31 = por %p29, %p30
    %p32 = scmp.ne.s32.totalorder %s21, %s22
    %p33 = scmp.eq.s32.totalorder %s13, 0
    %p34 = por %p32, %p33
    %p35 = scmp.ne.s32.totalorder %s21, %s22
    %p36 = scmp.eq.s32.totalorder %s14, 1
    %p37 = por %p35, %p36
    %p39 = scmp.ne.s32.totalorder %s22, %s38
    %p40 = scmp.eq.s32.totalorder %s14, 0
    %p41 = por %p39, %p40
    %s43 = sadd.s32 %s42, 1
    %p46 = scmp.eq.s32.totalorder %s8, 1
    %p47 = scmp.ne.s32.totalorder %s42, %s44
    %p48 = scmp.eq.s32.totalorder %s8, 0
    %p49 = por %p47, %p48
    %p50 = scmp.ne.s32.totalorder %s42, %s44
    %p51 = scmp.eq.s32.totalorder %s13, 1
    %p52 = por %p50, %p51
    %p53 = scmp.ne.s32.totalorder %s44, %s45
    %p54 = scmp.eq.s32.totalorder %s13, 0
    %p55 = por %p53, %p54
    %p56 = scmp.ne.s32.totalorder %s44, %s45
    %p57 = scmp.eq.s32.totalorder %s14, 1
    %p58 = por %p56, %p57
    %p60 = scmp.ne.s32.totalorder %s45, %s59
    %p61 = scmp.eq.s32.totalorder %s14, 0
    %p62 = por %p60, %p61
    %s63 = ssub.s32 %s8, %s15
    %p64 = scmp.eq.s32.totalorder %s63, 0
    %s66 = sadd.s32 %s65, 1
    %s67 = scalar_select %p64, %s65, %s66
    %p70 = pneg %p64
    %p71 = scmp.eq.s32.totalorder %s8, 1
    %p72 = por %p70, %p71
    %p73 = scmp.ne.s32.totalorder %s65, %s68
    %p74 = scmp.eq.s32.totalorder %s8, 0
    %p75 = por %p73, %p74
    %p76 = scmp.ne.s32.totalorder %s65, %s68
    %p77 = scmp.eq.s32.totalorder %s13, 1
    %p78 = por %p76, %p77
    %p79 = scmp.ne.s32.totalorder %s68, %s69
    %p80 = scmp.eq.s32.totalorder %s13, 0
    %p81 = por %p79, %p80
    %p82 = scmp.ne.s32.totalorder %s68, %s69
    %p83 = scmp.eq.s32.totalorder %s14, 1
    %p84 = por %p82, %p83
    %p86 = scmp.ne.s32.totalorder %s69, %s85
    %p87 = scmp.eq.s32.totalorder %s14, 0
    %p88 = por %p86, %p87
    %p89 = scmp.le.s32.totalorder 1, %s8
    %p90 = scmp.lt.s32.totalorder %s8, 3
    %p91 = pnand %p89, %p90
    %p92 = pneg %p91
    // Predicated region
    $region9: #{tpu_custom_call.1} parent=5 // pred_check
      _
    $region10: #{tpu_custom_call.1} parent=5 // pred_check_branch
      %94 = sbr.rel (%p91) target = $region12
    $region11: #{tpu_custom_call.1} parent=5 // pred_region
      %s95 = ssub.s32 %s8, 1
      // Predicated region
      $region13: #{tpu_custom_call.1} parent=11 // pred_check
        %p96 = pneg %p55
      $region14: #{tpu_custom_call.1} parent=11 // pred_check_branch
        %98 = sbr.rel (%p96) target = $region16
      $region15: #{tpu_custom_call.1} parent=11 // pred_region
        _
      $region16: #{tpu_custom_call.1} parent=11 // pred_fallthru
        _
    $region12: #{tpu_custom_call.1} parent=5 // pred_fallthru
      _
    %p99 = scmp.lt.s32.totalorder %s8, 2
    // Predicated region
    $region17: #{tpu_custom_call.1} parent=5 // pred_check
      %p100 = pneg %p99
    $region18: #{tpu_custom_call.1} parent=5 // pred_check_branch
      %102 = sbr.rel (%p100) target = $region20
    $region19: #{tpu_custom_call.1} parent=5 // pred_region
      // Predicated region
      $region21: #{tpu_custom_call.1} parent=19 // pred_check
        %p103 = pneg %p28
      $region22: #{tpu_custom_call.1} parent=19 // pred_check_branch
        %105 = sbr.rel (%p103) target = $region24
      $region23: #{tpu_custom_call.1} parent=19 // pred_region
        %s106 = smul.u32 2, %s8
        %p107 = scmp.lt.s32.totalorder %s106, 3
        %s108 = scalar_select %p107, %s106, 3
        %s109 = smul.addr %s108, 2
        %s110 = smul.addr %s109, 8
        %s111 = scalar_lea.vmem %s0, %s110
        %s112 = smul.u32 2, %s8
      $region24: #{tpu_custom_call.1} parent=19 // pred_fallthru
        _
    $region20: #{tpu_custom_call.1} parent=5 // pred_fallthru
      _
    %p113 = scmp.le.s32.totalorder 1, %s8
    %p114 = scmp.lt.s32.totalorder %s8, 3
    %p115 = pnand %p113, %p114
    %p116 = pneg %p115
    // Predicated region
    $region25: #{tpu_custom_call.1} parent=5 // pred_check
      _
    $region26: #{tpu_custom_call.1} parent=5 // pred_check_branch
      %118 = sbr.rel (%p115) target = $region28
    $region27: #{tpu_custom_call.1} parent=5 // pred_region
      %s119 = ssub.s32 %s8, 1
      %s120 = smul.u32 2, %s13
      %p121 = scmp.lt.s32.totalorder %s120, 3
      %s122 = scalar_select %p121, %s120, 3
      %s123 = smul.addr %s122, 2
      %s124 = smul.addr %s123, 8
      %s125 = scalar_lea.vmem %s0, %s124
      %p126 = pneg %p34
      %p127 = pneg %p31
      %p128 = pneg %p55
      %p129 = pneg %p52
      %p130 = pneg %p81
      %p131 = pneg %p78
      %s132 = smul.u32 2, %s13
      %p133 = scmp.lt.s32.totalorder %s132, 3
      %s134 = scalar_select %p133, %s132, 3
      %s135 = smul.addr %s134, 3
      %s136 = smul.addr %s135, 8
      %s137 = scalar_lea.vmem %s2, %s136
      %s138 = smul.u32 2, %s13
      %p139 = scmp.lt.s32.totalorder %s138, 3
      %s140 = scalar_select %p139, %s138, 3
      %s141 = smul.addr %s140, 2
      %s142 = smul.addr %s141, 8
      %s143 = scalar_lea.vmem %s0, %s142
      %s144 = smul.u32 2, %s13
      %s145 = smul.u32 2, %s13
      %p146 = scmp.lt.s32.totalorder %s145, 3
      %s147 = scalar_select %p146, %s145, 3
      %s148 = smul.addr %s147, 3
      %s149 = smul.addr %s148, 8
      %s150 = scalar_lea.vmem %s2, %s149
      %s151 = smul.u32 2, %s13
      %v152 = vld [vmem:[%s143] sm:$0xff]
      %v153 = vld [vmem:[%s143 + $0x8] sm:$0xff]
      %v154 = vld [vmem:[%s143 + $0x10] sm:$0xff]
      %v155 = vld [vmem:[%s143 + $0x18] sm:$0xff]
      %v156 = vld [vmem:[%s1] sm:$0xff]
      %vm157 = vcmask 64512
      %v159 = vsel %vm157, %v152, 0
      %v162 = vsel %vm157, %v153, 0
      %v165 = vsel %vm157, %v154, 0
      %v168 = vsel %vm157, %v155, 0
      %170 = vmatprep.subr.mxu0 0.0
      %171 = vmatpush1.msra.mxu0 %v156
      %172 = vmatprep.subr.mxu0 0.0
      %173 = vmatpush1.msra.mxu0 0.0
      %174 = vmatprep.subr.mxu0 0.0
      %175 = vmatpush1.msra.mxu0 0.0
      %176 = vmatprep.subr.mxu0 0.0
      %177 = vmatpush1.msra.mxu0 0.0
      %178 = vmatprep.subr.mxu0 0.0
      %179 = vmatpush1.msra.mxu0 0.0
      %180 = vmatprep.subr.mxu0 0.0
      %181 = vmatpush1.msra.mxu0 0.0
      %182 = vmatprep.subr.mxu0 0.0
      %183 = vmatpush1.msra.mxu0 0.0
      %184 = vmatprep.subr.mxu0 0.0
      %185 = vmatpush1.msra.mxu0 0.0
      %186 = vmatprep.subr.mxu0 0.0
      %187 = vmatpush1.msra.mxu0 0.0
      %188 = vmatprep.subr.mxu0 0.0
      %189 = vmatpush1.msra.mxu0 0.0
      %190 = vmatprep.subr.mxu0 0.0
      %191 = vmatpush1.msra.mxu0 0.0
      %192 = vmatprep.subr.mxu0 0.0
      %193 = vmatpush1.msra.mxu0 0.0
      %194 = vmatprep.subr.mxu0 0.0
      %195 = vmatpush1.msra.mxu0 0.0
      %196 = vmatprep.subr.mxu0 0.0
      %197 = vmatpush1.msra.mxu0 0.0
      %198 = vmatprep.subr.mxu0 0.0
      %199 = vmatpush1.msra.mxu0 0.0
      %200 = vmatprep.subr.mxu0 0.0
      %201 = vmatpush1.msra.mxu0 0.0
      %202 = vmatprep.subr.mxu0 0.0
      %203 = vmatpush1.msra.mxu0 0.0
      %204 = vmatprep.subr.mxu0 0.0
      %205 = vmatpush1.msra.mxu0 0.0
      %206 = vmatprep.subr.mxu0 0.0
      %207 = vmatpush1.msra.mxu0 0.0
      %208 = vmatprep.subr.mxu0 0.0
      %209 = vmatpush1.msra.mxu0 0.0
      %210 = vmatprep.subr.mxu0 0.0
      %211 = vmatpush1.msra.mxu0 0.0
      %212 = vmatprep.subr.mxu0 0.0
      %213 = vmatpush1.msra.mxu0 0.0
      %214 = vmatprep.subr.mxu0 0.0
      %215 = vmatpush1.msra.mxu0 0.0
      %216 = vmatprep.subr.mxu0 0.0
      %217 = vmatpush1.msra.mxu0 0.0
      %218 = vmatprep.subr.mxu0 0.0
      %219 = vmatpush1.msra.mxu0 0.0
      %220 = vmatprep.subr.mxu0 0.0
      %221 = vmatpush1.msra.mxu0 0.0
      %222 = vmatprep.subr.mxu0 0.0
      %223 = vmatpush1.msra.mxu0 0.0
      %224 = vmatprep.subr.mxu0 0.0
      %225 = vmatpush1.msra.mxu0 0.0
      %226 = vmatprep.subr.mxu0 0.0
      %227 = vmatpush1.msra.mxu0 0.0
      %228 = vmatprep.subr.mxu0 0.0
      %229 = vmatpush1.msra.mxu0 0.0
      %230 = vmatprep.subr.mxu0 0.0
      %231 = vmatpush1.msra.mxu0 0.0
      %232 = vmatprep.subr.mxu0 0.0
      %233 = vmatpush1.msra.mxu0 0.0
      %234 = vmatprep.mubr.f32.mxu0 0.0
      %235 = vmatmul.mubr.f32.gmra.mrb[0].mxu0 %v159
      %v236 = vpop.f32.mrb[0].mxu0
      %v237 = vadd.f32 0.0, %v236
      %v238 = vpop.f32.mrb[0].mxu0
      %239 = vmatprep.mubr.f32.mxu0 0.0
      %240 = vmatmul.mubr.f32.gmra.mrb[0].mxu0 %v162
      %v241 = vpop.f32.mrb[0].mxu0
      %v242 = vadd.f32 0.0, %v241
      %v243 = vpop.f32.mrb[0].mxu0
      %244 = vmatprep.mubr.f32.mxu0 0.0
      %245 = vmatmul.mubr.f32.gmra.mrb[0].mxu0 %v165
      %v246 = vpop.f32.mrb[0].mxu0
      %v247 = vadd.f32 0.0, %v246
      %v248 = vpop.f32.mrb[0].mxu0
      %249 = vmatprep.mubr.f32.mxu0 0.0
      %250 = vmatmul.mubr.f32.gmra.mrb[0].mxu0 %v168
      %v251 = vpop.f32.mrb[0].mxu0
      %v252 = vadd.f32 0.0, %v251
      %v253 = vpop.f32.mrb[0].mxu0
      %254 = vdwg.mxu0
      %vm259 = vcmask 1040384
      %v260 = vrot.slane %v237, 7
      %v261 = vrot.slane %v242, 7
      %v262 = vsel %vm259, %v260, %v261
      %v263 = vrot.slane %v247, 7
      %v264 = vrot.slane %v252, 7
      %v265 = vsel %vm259, %v263, %v264
      %266 = vrot.lane.b32.xlu0 %v260, 112
      %v267 = vpop.permute.xlu0 %266
      %268 = vrot.lane.b32.xlu0 %v262, 112
      %v269 = vpop.permute.xlu0 %268
      %270 = vrot.lane.b32.xlu0 %v261, 112
      %v271 = vpop.permute.xlu0 %270
      %272 = vrot.lane.b32.xlu0 %v263, 112
      %v273 = vpop.permute.xlu0 %272
      %274 = vrot.lane.b32.xlu0 %v265, 112
      %v275 = vpop.permute.xlu0 %274
      %276 = vrot.lane.b32.xlu0 %v264, 112
      %v277 = vpop.permute.xlu0 %276
      %v284 = vsel %vm259, 0.0, %v267
      %v285 = vsel %vm259, 0.0, %v273
      %v286 = vadd.f32 %v237, %v284
      %v287 = vadd.f32 %v242, %v269
      %v288 = vadd.f32 %v271, 0.0
      %v289 = vadd.f32 %v247, %v285
      %v290 = vadd.f32 %v252, %v275
      %v291 = vadd.f32 %v277, 0.0
      %vm292 = vcmask 130048
      %v293 = vsel %vm292, %v286, 0.0
      %v294 = vsel %vm292, %v287, 0.0
      %v295 = vadd.f32 %v293, %v294
      %vm296 = vcmask 122880
      %v297 = vsel %vm296, %v288, 0.0
      %v298 = vadd.f32 %v295, %v297
      %v299 = vrot.slane %v298, 4
      %v300 = vadd.f32 %v298, %v299
      %v301 = vrot.slane %v300, 2
      %v302 = vadd.f32 %v300, %v301
      %v303 = vrot.slane %v302, 1
      %v304 = vadd.f32 %v302, %v303
      %v305 = vsel %vm292, %v289, 0.0
      %v306 = vsel %vm292, %v290, 0.0
      %v307 = vadd.f32 %v305, %v306
      %v308 = vsel %vm296, %v291, 0.0
      %v309 = vadd.f32 %v307, %v308
      %v310 = vrot.slane %v309, 4
      %v311 = vadd.f32 %v309, %v310
      %v312 = vrot.slane %v311, 2
      %v313 = vadd.f32 %v311, %v312
      %v314 = vrot.slane %v313, 1
      %v315 = vadd.f32 %v313, %v314
      %318 = vrot.lane.b32.xlu0 %v304, 120
      %v319 = vpop.permute.xlu0 %318
      %320 = vrot.lane.b32.xlu0 %v315, 120
      %v321 = vpop.permute.xlu0 %320
      %v324 = vadd.f32 %v304, %v319
      %v325 = vadd.f32 %v315, %v321
      %v326 = vrcp.pop 34.0
      %v327 = vmul.f32 %v324, %v326
      %v328 = vmul.f32 %v325, %v326
      %331 = vrot.lane.b32.xlu0 %v327, 8
      %v332 = vpop.permute.xlu0 %331
      %333 = vrot.lane.b32.xlu0 %v328, 8
      %v334 = vpop.permute.xlu0 %333
      %v337 = vsel %vm157, %v327, %v332
      %v338 = vsel %vm157, %v328, %v334
      %v339 = vlaneseq
      %v340 = vshrl.u32 %v339, 7
      %v341 = vsub.s32 0, %v340
      %v342 = vrot.slane %v337, %v341
      %v343 = vlaneseq
      %v344 = vshrl.u32 %v343, 7
      %v345 = vsub.s32 0, %v344
      %v346 = vrot.slane %v338, %v345
      %v347 = vsub.f32 %v286, %v342
      %v348 = vsub.f32 %v287, %v342
      %v349 = vsub.f32 %v288, %v342
      %v350 = vsub.f32 %v289, %v346
      %v351 = vsub.f32 %v290, %v346
      %v352 = vsub.f32 %v291, %v346
      %v353 = vmul.f32 %v347, %v347
      %v354 = vmul.f32 %v348, %v348
      %v355 = vmul.f32 %v349, %v349
      %v356 = vmul.f32 %v350, %v350
      %v357 = vmul.f32 %v351, %v351
      %v358 = vmul.f32 %v352, %v352
      %v359 = vsel %vm292, %v353, 0.0
      %v360 = vsel %vm292, %v354, 0.0
      %v361 = vadd.f32 %v359, %v360
      %v362 = vsel %vm296, %v355, 0.0
      %v363 = vadd.f32 %v361, %v362
      %v364 = vrot.slane %v363, 4
      %v365 = vadd.f32 %v363, %v364
      %v366 = vrot.slane %v365, 2
      %v367 = vadd.f32 %v365, %v366
      %v368 = vrot.slane %v367, 1
      %v369 = vadd.f32 %v367, %v368
      %v370 = vsel %vm292, %v356, 0.0
      %v371 = vsel %vm292, %v357, 0.0
      %v372 = vadd.f32 %v370, %v371
      %v373 = vsel %vm296, %v358, 0.0
      %v374 = vadd.f32 %v372, %v373
      %v375 = vrot.slane %v374, 4
      %v376 = vadd.f32 %v374, %v375
      %v377 = vrot.slane %v376, 2
      %v378 = vadd.f32 %v376, %v377
      %v379 = vrot.slane %v378, 1
      %v380 = vadd.f32 %v378, %v379
      %383 = vrot.lane.b32.xlu0 %v369, 120
      %v384 = vpop.permute.xlu0 %383
      %385 = vrot.lane.b32.xlu0 %v380, 120
      %v386 = vpop.permute.xlu0 %385
      %v389 = vadd.f32 %v369, %v384
      %v390 = vadd.f32 %v380, %v386
      %v391 = vmul.f32 %v389, %v326
      %v392 = vmul.f32 %v390, %v326
      %v393 = vadd.f32 %v391, 1e-05
      %v394 = vadd.f32 %v392, 1e-05
      %v395 = vrsqrt.pop %v393
      %v396 = vrsqrt.pop %v394
      %399 = vrot.lane.b32.xlu0 %v395, 8
      %v400 = vpop.permute.xlu0 %399
      %401 = vrot.lane.b32.xlu0 %v396, 8
      %v402 = vpop.permute.xlu0 %401
      %v405 = vsel %vm157, %v395, %v400
      %v406 = vsel %vm157, %v396, %v402
      %v407 = vlaneseq
      %v408 = vshrl.u32 %v407, 7
      %v409 = vsub.s32 0, %v408
      %v410 = vrot.slane %v405, %v409
      %v411 = vlaneseq
      %v412 = vshrl.u32 %v411, 7
      %v413 = vsub.s32 0, %v412
      %v414 = vrot.slane %v406, %v413
      %v415 = vmul.f32 %v347, %v410
      %v416 = vmul.f32 %v348, %v410
      %v417 = vmul.f32 %v349, %v410
      %v418 = vmul.f32 %v350, %v414
      %v419 = vmul.f32 %v351, %v414
      %v420 = vmul.f32 %v352, %v414
      %v421 = vmax.f32 %v415, 0.0
      %v422 = vmax.f32 %v416, 0.0
      %v423 = vmax.f32 %v417, 0.0
      %v424 = vmax.f32 %v418, 0.0
      %v425 = vmax.f32 %v419, 0.0
      %v426 = vmax.f32 %v420, 0.0
      %427 = vst.msk [vmem:[%s150] sm:$0xff] %vm292, %v421
      %428 = vst.msk [vmem:[%s150 + $0x8] sm:$0xff] %vm292, %v422
      %429 = vst.msk [vmem:[%s150 + $0x10] sm:$0x1] %vm296, %v423
      %430 = vst.msk [vmem:[%s150 + $0x18] sm:$0xff] %vm292, %v424
      %431 = vst.msk [vmem:[%s150 + $0x20] sm:$0xff] %vm292, %v425
      %432 = vst.msk [vmem:[%s150 + $0x28] sm:$0x1] %vm296, %v426
      %s433 = smul.u32 2, %s13
      %p434 = scmp.lt.s32.totalorder %s433, 3
      %s435 = scalar_select %p434, %s433, 3
      %s436 = smul.addr %s435, 3
      %s437 = smul.addr %s436, 8
      %s438 = scalar_lea.vmem %s2, %s437
      // Predicated region
      $region29: #{tpu_custom_call.1} parent=27 // pred_check
        %p439 = pneg %p78
      $region30: #{tpu_custom_call.1} parent=27 // pred_check_branch
        %441 = sbr.rel (%p439) target = $region32
      $region31: #{tpu_custom_call.1} parent=27 // pred_region
        %s442 = smul.u32 2, %s13
      $region32: #{tpu_custom_call.1} parent=27 // pred_fallthru
        _
    $region28: #{tpu_custom_call.1} parent=5 // pred_fallthru
      _
    %p443 = scmp.le.s32.totalorder 2, %s8
    // Predicated region
    $region33: #{tpu_custom_call.1} parent=5 // pred_check
      %p444 = pneg %p443
    $region34: #{tpu_custom_call.1} parent=5 // pred_check_branch
      %446 = sbr.rel (%p444) target = $region36
    $region35: #{tpu_custom_call.1} parent=5 // pred_region
      %s447 = ssub.s32 %s8, 2
      // Predicated region
      $region37: #{tpu_custom_call.1} parent=35 // pred_check
        %p448 = pneg %p84
      $region38: #{tpu_custom_call.1} parent=35 // pred_check_branch
        %450 = sbr.rel (%p448) target = $region40
      $region39: #{tpu_custom_call.1} parent=35 // pred_region
        %s451 = smul.u32 2, %s14
        %p452 = scmp.lt.s32.totalorder %s451, 3
        %s453 = scalar_select %p452, %s451, 3
        %s454 = smul.addr %s453, 3
        %s455 = smul.addr %s454, 8
        %s456 = scalar_lea.vmem %s2, %s455
      $region40: #{tpu_custom_call.1} parent=35 // pred_fallthru
        _
    $region36: #{tpu_custom_call.1} parent=5 // pred_fallthru
      _
  $region6: #{tpu_custom_call.1} parent=0 // loop_footer
    %s12 = sadd.s32 1, %s8
  $region7: #{tpu_custom_call.1} parent=0 // loop_footer_branch
    %7 = sbr.rel target = $region3
  $region8: #{tpu_custom_call.1} parent=0 // loop_exit
    _

</llo_original>
